<compile_context>
chip_gen: v5e
topology: v5e:2x2
jax: 0.10.0
libtpu: 0.0.40
codegen_flags: <defaults>
</compile_context>

<pallas_src>
import functools

import numpy as np
import jax
import jax.numpy as jnp
from jax.experimental import pallas as pl
from jax.experimental.pallas import tpu as pltpu

NUM_OPS = 4
K = 1
CHANNEL = 960
HIDDEN = 2 * K * NUM_OPS          # 8
OUT = K * NUM_OPS                 # 4


def _round_up(x, m):
    return (x + m - 1) // m * m


def _oa_layer_kernel(x_ref, w1_ref, b1_ref, w2_ref, b2_ref, o_ref, acc_ref, *, inv_hw):
    # x_ref : (1, TR, C)  channels-last tile of the flattened spatial dim
    # w1_ref: (C, HIDDEN)   b1_ref: (1, HIDDEN)
    # w2_ref: (HIDDEN, OUT) b2_ref: (1, OUT)
    # o_ref : (1, K, NUM_OPS) output block, resident across the row-tile axis
    # acc_ref: (1, C) f32 running channel-sum scratch
    t = pl.program_id(1)

    @pl.when(t == 0)
    def _():
        acc_ref[...] = jnp.zeros_like(acc_ref)

    tile = x_ref[0]                                           # (TR, C)
    ones = jnp.ones((1, tile.shape[0]), tile.dtype)
    # Spatial sum of this tile as one MXU matmul (replaces the old serial loop).
    acc_ref[...] += jnp.dot(ones, tile, preferred_element_type=jnp.float32)

    @pl.when(t == pl.num_programs(1) - 1)
    def _():
        pooled = acc_ref[...] * inv_hw                        # AdaptiveAvgPool2d(1)
        h = jnp.dot(pooled, w1_ref[...],
                    preferred_element_type=jnp.float32) + b1_ref[...]
        h = jnp.maximum(h, 0.0)                               # ReLU
        y = jnp.dot(h, w2_ref[...],
                    preferred_element_type=jnp.float32) + b2_ref[...]
        o_ref[0] = y.astype(o_ref.dtype)                      # (k, num_ops) = (1, 4)


def oa_layer_forward(x_nchw, params, *, row_tile=512):
    """OALayer.forward on a PyTorch-style NCHW input. Returns (B, k, num_ops)."""
    B, C, H, W = x_nchw.shape
    HW = H * W
    # Channels-last + flattened spatial so C sits on the lane (minor) axis.
    x = jnp.transpose(x_nchw, (0, 2, 3, 1)).reshape(B, HW, C)

    tr = min(row_tile, _round_up(HW, 8))
    hw_pad = _round_up(HW, tr)
    if hw_pad != HW:
        # Zero rows are harmless: we accumulate a sum and divide by the true H*W.
        x = jnp.pad(x, ((0, 0), (0, hw_pad - HW), (0, 0)))
    n_tiles = hw_pad // tr

    w1 = params["fc1_w"]                       # (C, HIDDEN)
    b1 = params["fc1_b"].reshape(1, -1)        # (1, HIDDEN)
    w2 = params["fc2_w"]                       # (HIDDEN, OUT)
    b2 = params["fc2_b"].reshape(1, -1)        # (1, OUT)
    hidden = w1.shape[1]
    out_dim = w2.shape[1]

    kernel = functools.partial(_oa_layer_kernel, inv_hw=1.0 / float(HW))
    return pl.pallas_call(
        kernel,
        out_shape=jax.ShapeDtypeStruct((B, K, NUM_OPS), jnp.float32),
        grid_spec=pltpu.PrefetchScalarGridSpec(
            num_scalar_prefetch=0,
            grid=(B, n_tiles),
            in_specs=[
                pl.BlockSpec((1, tr, C), lambda b, t: (b, t, 0)),
                pl.BlockSpec((C, hidden), lambda b, t: (0, 0)),
                pl.BlockSpec((1, hidden), lambda b, t: (0, 0)),
                pl.BlockSpec((hidden, out_dim), lambda b, t: (0, 0)),
                pl.BlockSpec((1, out_dim), lambda b, t: (0, 0)),
            ],
            out_specs=pl.BlockSpec((1, K, NUM_OPS), lambda b, t: (b, 0, 0)),
            scratch_shapes=[pltpu.VMEM((1, C), jnp.float32)],
        ),
        compiler_params=pltpu.CompilerParams(
            dimension_semantics=("parallel", "arbitrary")),
    )(x, w1, b1, w2, b2)


def init_params(key, channel=CHANNEL, num_ops=NUM_OPS, k=K):
    # PyTorch nn.Linear default init; weights stored (in, out) for x @ W.
    hidden = 2 * k * num_ops
    out = k * num_ops
    k1, k2, k3, k4 = jax.random.split(key, 4)
    lim1 = 1.0 / np.sqrt(float(channel))
    lim2 = 1.0 / np.sqrt(float(hidden))
    return {
        "fc1_w": jax.random.uniform(k1, (channel, hidden), jnp.float32, -lim1, lim1),
        "fc1_b": jax.random.uniform(k2, (hidden,), jnp.float32, -lim1, lim1),
        "fc2_w": jax.random.uniform(k3, (hidden, out), jnp.float32, -lim2, lim2),
        "fc2_b": jax.random.uniform(k4, (out,), jnp.float32, -lim2, lim2),
    }


def oa_layer_reference(x_nchw, params):
    # Pure-JAX reference of OALayer.forward for correctness checking.
    pooled = jnp.mean(x_nchw, axis=(2, 3))                              # (B, C)
    h = jnp.maximum(pooled @ params["fc1_w"] + params["fc1_b"], 0.0)
    y = h @ params["fc2_w"] + params["fc2_b"]
    return y.reshape(-1, K, NUM_OPS)


if __name__ == "__main__":
    key = jax.random.PRNGKey(0)
    kx, kp = jax.random.split(key)

    # Small shapes consistent with the module: channel=960 (Linear input), k=1,
    # num_ops=4, batch=2, spatial 16x16.
    B, C, H, W = 2, CHANNEL, 16, 16
    x = jax.random.normal(kx, (B, C, H, W), jnp.float32)
    params = init_params(kp)

    fwd = jax.jit(oa_layer_forward)
    out = jax.block_until_ready(fwd(x, params))

    ref = oa_layer_reference(x, params)
    assert out.shape == (B, K, NUM_OPS), out.shape
    assert out.dtype == jnp.float32
    assert bool(jnp.all(jnp.isfinite(out)))
    assert bool(jnp.allclose(out, ref, atol=1e-4, rtol=1e-4)), (out, ref)
    print("KERNEL_OK")
</pallas_src>

<mosaic_0001>
module attributes {stable_mosaic.version = 11 : i64} {
  func.func @_oa_layer_kernel(%arg0: i32, %arg1: i32, %arg2: memref<1x256x960xf32, #tpu.memory_space<vmem>>, %arg3: memref<960x8xf32, #tpu.memory_space<vmem>>, %arg4: memref<1x8xf32, #tpu.memory_space<vmem>>, %arg5: memref<8x4xf32, #tpu.memory_space<vmem>>, %arg6: memref<1x4xf32, #tpu.memory_space<vmem>>, %arg7: memref<1x1x4xf32, #tpu.memory_space<vmem>>, %arg8: memref<1x960xf32, #tpu.memory_space<vmem>>) attributes {dimension_semantics = [#tpu.dimension_semantics<parallel>, #tpu.dimension_semantics<arbitrary>], iteration_bounds = array<i64: 2, 1>, scalar_prefetch = 0 : i64, scratch_operands = 1 : i64, tpu.core_type = #tpu.core_type<tc>, window_params = [{transform_indices = @transform_0, window_bounds = array<i64: 1, 256, 960>}, {pipeline_mode = #tpu.pipeline_mode<synchronous>, transform_indices = @transform_1, window_bounds = array<i64: 960, 8>}, {pipeline_mode = #tpu.pipeline_mode<synchronous>, transform_indices = @transform_2, window_bounds = array<i64: 1, 8>}, {pipeline_mode = #tpu.pipeline_mode<synchronous>, transform_indices = @transform_3, window_bounds = array<i64: 8, 4>}, {pipeline_mode = #tpu.pipeline_mode<synchronous>, transform_indices = @transform_4, window_bounds = array<i64: 1, 4>}, {transform_indices = @transform_5, window_bounds = array<i64: 1, 1, 4>}]} {
    %c0_i32 = arith.constant 0 : i32
    %0 = arith.cmpi eq, %arg1, %c0_i32 : i32
    %1 = arith.extui %0 : i1 to i32
    %c0_i32_0 = arith.constant 0 : i32
    %2 = arith.cmpi ne, %1, %c0_i32_0 : i32
    scf.if %2 {
      %cst_10 = arith.constant 0.000000e+00 : f32
      %13 = vector.broadcast %cst_10 : f32 to vector<1x960xf32>
      %c0_11 = arith.constant 0 : index
      %c0_12 = arith.constant 0 : index
      %14 = vector.load %arg8[%c0_11, %c0_12] : memref<1x960xf32, #tpu.memory_space<vmem>>, vector<1x960xf32>
      tpu.vector_store %arg8[%c0_11, %c0_12], %13 {strides = array<i32>} : memref<1x960xf32, #tpu.memory_space<vmem>>, vector<1x960xf32>,
    } else {
    }
    %c0 = arith.constant 0 : index
    %c0_1 = arith.constant 0 : index
    %c0_2 = arith.constant 0 : index
    %3 = vector.load %arg2[%c0, %c0_1, %c0_2] : memref<1x256x960xf32, #tpu.memory_space<vmem>>, vector<1x256x960xf32>
    %4 = vector.shape_cast %3 : vector<1x256x960xf32> to vector<256x960xf32>
    %cst = arith.constant 1.000000e+00 : f32
    %5 = vector.broadcast %cst : f32 to vector<1x256xf32>
    %c0_3 = arith.constant 0 : index
    %c0_4 = arith.constant 0 : index
    %6 = vector.load %arg8[%c0_3, %c0_4] : memref<1x960xf32, #tpu.memory_space<vmem>>, vector<1x960xf32>
    %cst_5 = arith.constant dense<0.000000e+00> : vector<1x960xf32>
    %7 = tpu.matmul %5, %4, %cst_5 {dimension_numbers = #tpu.dot_dimension_numbers<[1], [0], [0], [1], [0, 0, 1, 1], [], []>} : vector<1x256xf32>, vector<256x960xf32>, vector<1x960xf32> -> vector<1x960xf32>
    %8 = arith.addf %6, %7 : vector<1x960xf32>
    %c0_6 = arith.constant 0 : index
    %c0_7 = arith.constant 0 : index
    %9 = vector.load %arg8[%c0_6, %c0_7] : memref<1x960xf32, #tpu.memory_space<vmem>>, vector<1x960xf32>
    tpu.vector_store %arg8[%c0_6, %c0_7], %8 {strides = array<i32>} : memref<1x960xf32, #tpu.memory_space<vmem>>, vector<1x960xf32>,
    %c0_i32_8 = arith.constant 0 : i32
    %10 = arith.cmpi eq, %arg1, %c0_i32_8 : i32
    %11 = arith.extui %10 : i1 to i32
    %c0_i32_9 = arith.constant 0 : i32
    %12 = arith.cmpi ne, %11, %c0_i32_9 : i32
    scf.if %12 {
      %c0_10 = arith.constant 0 : index
      %c0_11 = arith.constant 0 : index
      %13 = vector.load %arg8[%c0_10, %c0_11] : memref<1x960xf32, #tpu.memory_space<vmem>>, vector<1x960xf32>
      %cst_12 = arith.constant 3.906250e-03 : f32
      %14 = vector.broadcast %cst_12 : f32 to vector<1x960xf32>
      %15 = arith.mulf %13, %14 : vector<1x960xf32>
      %c0_13 = arith.constant 0 : index
      %c0_14 = arith.constant 0 : index
      %16 = vector.load %arg3[%c0_13, %c0_14] : memref<960x8xf32, #tpu.memory_space<vmem>>, vector<960x8xf32>
      %cst_15 = arith.constant dense<0.000000e+00> : vector<1x8xf32>
      %17 = tpu.matmul %15, %16, %cst_15 {dimension_numbers = #tpu.dot_dimension_numbers<[1], [0], [0], [1], [0, 0, 1, 1], [], []>} : vector<1x960xf32>, vector<960x8xf32>, vector<1x8xf32> -> vector<1x8xf32>
      %c0_16 = arith.constant 0 : index
      %c0_17 = arith.constant 0 : index
      %18 = vector.load %arg4[%c0_16, %c0_17] : memref<1x8xf32, #tpu.memory_space<vmem>>, vector<1x8xf32>
      %19 = arith.addf %17, %18 : vector<1x8xf32>
      %cst_18 = arith.constant 0.000000e+00 : f32
      %20 = vector.broadcast %cst_18 : f32 to vector<1x8xf32>
      %21 = arith.maximumf %19, %20 : vector<1x8xf32>
      %c0_19 = arith.constant 0 : index
      %c0_20 = arith.constant 0 : index
      %22 = vector.load %arg5[%c0_19, %c0_20] : memref<8x4xf32, #tpu.memory_space<vmem>>, vector<8x4xf32>
      %cst_21 = arith.constant dense<0.000000e+00> : vector<1x4xf32>
      %23 = tpu.matmul %21, %22, %cst_21 {dimension_numbers = #tpu.dot_dimension_numbers<[1], [0], [0], [1], [0, 0, 1, 1], [], []>} : vector<1x8xf32>, vector<8x4xf32>, vector<1x4xf32> -> vector<1x4xf32>
      %c0_22 = arith.constant 0 : index
      %c0_23 = arith.constant 0 : index
      %24 = vector.load %arg6[%c0_22, %c0_23] : memref<1x4xf32, #tpu.memory_space<vmem>>, vector<1x4xf32>
      %25 = arith.addf %23, %24 : vector<1x4xf32>
      %c0_24 = arith.constant 0 : index
      %c0_25 = arith.constant 0 : index
      %c0_26 = arith.constant 0 : index
      %26 = vector.load %arg7[%c0_24, %c0_25, %c0_26] : memref<1x1x4xf32, #tpu.memory_space<vmem>>, vector<1x1x4xf32>
      %27 = vector.shape_cast %26 : vector<1x1x4xf32> to vector<1x4xf32>
      %28 = vector.shape_cast %25 : vector<1x4xf32> to vector<1x1x4xf32>
      tpu.vector_store %arg7[%c0_24, %c0_25, %c0_26], %28 {strides = array<i32>} : memref<1x1x4xf32, #tpu.memory_space<vmem>>, vector<1x1x4xf32>,
    } else {
    }
    return
  }
  func.func @transform_0(%arg0: i32, %arg1: i32) -> (i32, i32, i32) {
    %c0_i32 = arith.constant 0 : i32
    %c0_i32_0 = arith.constant 0 : i32
    return %arg0, %arg1, %c0_i32 : i32, i32, i32
  }
  func.func @transform_1(%arg0: i32, %arg1: i32) -> (i32, i32) {
    %c0_i32 = arith.constant 0 : i32
    %c0_i32_0 = arith.constant 0 : i32
    %c0_i32_1 = arith.constant 0 : i32
    return %c0_i32, %c0_i32_0 : i32, i32
  }
  func.func @transform_2(%arg0: i32, %arg1: i32) -> (i32, i32) {
    %c0_i32 = arith.constant 0 : i32
    %c0_i32_0 = arith.constant 0 : i32
    %c0_i32_1 = arith.constant 0 : i32
    return %c0_i32, %c0_i32_0 : i32, i32
  }
  func.func @transform_3(%arg0: i32, %arg1: i32) -> (i32, i32) {
    %c0_i32 = arith.constant 0 : i32
    %c0_i32_0 = arith.constant 0 : i32
    %c0_i32_1 = arith.constant 0 : i32
    return %c0_i32, %c0_i32_0 : i32, i32
  }
  func.func @transform_4(%arg0: i32, %arg1: i32) -> (i32, i32) {
    %c0_i32 = arith.constant 0 : i32
    %c0_i32_0 = arith.constant 0 : i32
    %c0_i32_1 = arith.constant 0 : i32
    return %c0_i32, %c0_i32_0 : i32, i32
  }
  func.func @transform_5(%arg0: i32, %arg1: i32) -> (i32, i32, i32) {
    %c0_i32 = arith.constant 0 : i32
    %c0_i32_0 = arith.constant 0 : i32
    %c0_i32_1 = arith.constant 0 : i32
    return %arg0, %c0_i32, %c0_i32_0 : i32, i32, i32
  }
}

</mosaic_0001>

<llo_original>
// kernel: oa_layer_forward.1
$region0: #{oa_layer_forward.1}
  #allocation0 [shape = 'u32[]', space=smem, size = 0x4, offset = 0x4, fixed_abs, tag = 'smem constant byte address 0x4 - core index']
  #allocation1 [shape = 'u32[72,128]{1,0:T(1,128)}', space=vmem, size = 0x9000, scoped, tag = 'internal scratch']
  #allocation2 [shape = 'f32[1,960]{1,0:T(1,128)}', space=vmem, size = 0x1000, scoped, tag = 'scratch operand']
  %s0 = inlined_call_operand.hbm [shape: f32[2,256,960], index: 0, kind: input, shape index: {}]
  %s1 = inlined_call_operand.vmem [shape: f32[960,8], index: 1, kind: input, shape index: {}]
  %s2 = inlined_call_operand.hbm [shape: f32[1,8], index: 2, kind: input, shape index: {}]
  %s3 = inlined_call_operand.vmem [shape: f32[8,4], index: 3, kind: input, shape index: {}]
  %s4 = inlined_call_operand.hbm [shape: f32[1,4], index: 4, kind: input, shape index: {}]
  %s5 = inlined_call_operand.hbm [shape: f32[2,1,4], index: 5, kind: output, shape index: {}]
  %s6 = sld [smem:[#allocation0]]
  $region73: #{oa_layer_forward.1} parent=0
    _
  %s8 = ssub.s32 1, %s6
  %s9 = scalar_select 0, %s8, %s6
  $region1: #{oa_layer_forward.1} parent=0
    #allocation3 [shape = 'u8[2097152]{0}', space=vmem, size = 0x200000, scoped, tag = 'input window, operand 0']
    #allocation4 [shape = 's32[2]{0}', space=sflag, size = 0x8, scoped, tag = 'scoped memory for oa_layer_forward.1']
    #allocation5 [shape = 's32[2]{0}', space=sflag, size = 0x8, scoped, tag = 'scoped memory for oa_layer_forward.1']
    #allocation6 [shape = 'u8[512]{0}', space=vmem, size = 0x400, scoped, tag = 'input window, operand 2, single buffered']
    #allocation7 [shape = 's32[1]{0}', space=sflag, size = 0x4, scoped, tag = 'scoped memory for oa_layer_forward.1']
    #allocation8 [shape = 'u8[512]{0}', space=vmem, size = 0x400, scoped, tag = 'input window, operand 4, single buffered']
    #allocation9 [shape = 'u8[1024]{0}', space=vmem, size = 0x400, scoped, tag = 'output window, operand 0']
    %10 = vsyncpa [#allocation4], 0
    %s11 = scalar_lea.sflag [#allocation4], 1
    %12 = vsyncpa %s11, 0
    %13 = vsyncpa [#allocation7], 0
    %14 = vsyncpa [#allocation5], 0
    %s15 = scalar_lea.sflag [#allocation5], 1
    %16 = vsyncpa %s15, 0
    loop: start=0, step=1, limit=4
    $region2: #{oa_layer_forward.1} parent=1 // loop_pre_header
      _
    $region3: #{oa_layer_forward.1} parent=1 // loop_header
      %s18 = sphi 0, %s22
      %p19 = scmp.ge.s32.totalorder %s18, 4
      %s25 = sphi 0, %s37
      %s26 = sphi 0, %s33
      %s27 = sphi 0, %s25
      %s28 = sphi 0, %s26
      %s29 = sphi 0, %s27
      %s30 = sphi 0, %s28
      %s42 = sphi 0, %s44
      %s45 = sphi 0, %s42
      %s46 = sphi 0, %s45
      %s62 = sphi 0, %s46
      %s66 = sphi 0, %s66
      %s68 = sphi 0, %s66
      %s69 = sphi 0, %s68
      %s83 = sphi 0, %s69
      %s87 = sphi 0, %s87
      %s89 = sphi 0, %s87
      %s90 = sphi 0, %s89
      %s104 = sphi 0, %s90
      %s108 = sphi 0, %s108
      %s110 = sphi 0, %s108
      %s111 = sphi 0, %s110
      %s125 = sphi 0, %s111
      %s129 = sphi 0, %s129
      %s131 = sphi 0, %s129
      %s132 = sphi 0, %s131
      %s146 = sphi 0, %s132
      %s152 = sphi 0, %s154
      %s155 = sphi 0, %s152
      %s156 = sphi 0, %s155
      %s172 = sphi 0, %s156
    $region4: #{oa_layer_forward.1} parent=1 // loop_header_branch
      %21 = sbr.rel (%p19) target = $region8
    $region5: #{oa_layer_forward.1} parent=1 // loop_body
      %s23 = ssub.s32 %s18, 1
      %s24 = ssub.s32 %s18, 2
      %s31 = sadd.s32 1, %s26
      %p32 = scmp.ge.s32.totalorder %s31, 1
      %s33 = scalar_select %p32, 0, %s31
      %s34 = sadd.s32 1, %s25
      %s35 = scalar_select %p32, %s34, %s25
      %p36 = scmp.ge.s32.totalorder %s35, 2
      %s37 = scalar_select %p36, 0, %s35
      %s38 = ssub.s32 %s25, %s37
      %s39 = ssub.s32 %s26, %s33
      %s40 = sor.u32 %s38, %s39
      %p41 = scmp.eq.s32.totalorder %s40, 0
      %s43 = sadd.s32 %s42, 1
      %s44 = scalar_select %p41, %s42, %s43
      %p47 = pneg %p41
      %p48 = scmp.eq.s32.totalorder %s18, 1
      %p49 = por %p47, %p48
      %p50 = scmp.ne.s32.totalorder %s42, %s45
      %p51 = scmp.eq.s32.totalorder %s18, 0
      %p52 = por %p50, %p51
      %p53 = scmp.ne.s32.totalorder %s42, %s45
      %p54 = scmp.eq.s32.totalorder %s23, 1
      %p55 = por %p53, %p54
      %p56 = scmp.ne.s32.totalorder %s45, %s46
      %p57 = scmp.eq.s32.totalorder %s23, 0
      %p58 = por %p56, %p57
      %p59 = scmp.ne.s32.totalorder %s45, %s46
      %p60 = scmp.eq.s32.totalorder %s24, 1
      %p61 = por %p59, %p60
      %p63 = scmp.ne.s32.totalorder %s46, %s62
      %p64 = scmp.eq.s32.totalorder %s24, 0
      %p65 = por %p63, %p64
      %s67 = sadd.s32 %s66, 1
      %p70 = scmp.eq.s32.totalorder %s18, 1
      %p71 = scmp.ne.s32.totalorder %s66, %s68
      %p72 = scmp.eq.s32.totalorder %s18, 0
      %p73 = por %p71, %p72
      %p74 = scmp.ne.s32.totalorder %s66, %s68
      %p75 = scmp.eq.s32.totalorder %s23, 1
      %p76 = por %p74, %p75
      %p77 = scmp.ne.s32.totalorder %s68, %s69
      %p78 = scmp.eq.s32.totalorder %s23, 0
      %p79 = por %p77, %p78
      %p80 = scmp.ne.s32.totalorder %s68, %s69
      %p81 = scmp.eq.s32.totalorder %s24, 1
      %p82 = por %p80, %p81
      %p84 = scmp.ne.s32.totalorder %s69, %s83
      %p85 = scmp.eq.s32.totalorder %s24, 0
      %p86 = por %p84, %p85
      %s88 = sadd.s32 %s87, 1
      %p91 = scmp.eq.s32.totalorder %s18, 1
      %p92 = scmp.ne.s32.totalorder %s87, %s89
      %p93 = scmp.eq.s32.totalorder %s18, 0
      %p94 = por %p92, %p93
      %p95 = scmp.ne.s32.totalorder %s87, %s89
      %p96 = scmp.eq.s32.totalorder %s23, 1
      %p97 = por %p95, %p96
      %p98 = scmp.ne.s32.totalorder %s89, %s90
      %p99 = scmp.eq.s32.totalorder %s23, 0
      %p100 = por %p98, %p99
      %p101 = scmp.ne.s32.totalorder %s89, %s90
      %p102 = scmp.eq.s32.totalorder %s24, 1
      %p103 = por %p101, %p102
      %p105 = scmp.ne.s32.totalorder %s90, %s104
      %p106 = scmp.eq.s32.totalorder %s24, 0
      %p107 = por %p105, %p106
      %s109 = sadd.s32 %s108, 1
      %p112 = scmp.eq.s32.totalorder %s18, 1
      %p113 = scmp.ne.s32.totalorder %s108, %s110
      %p114 = scmp.eq.s32.totalorder %s18, 0
      %p115 = por %p113, %p114
      %p116 = scmp.ne.s32.totalorder %s108, %s110
      %p117 = scmp.eq.s32.totalorder %s23, 1
      %p118 = por %p116, %p117
      %p119 = scmp.ne.s32.totalorder %s110, %s111
      %p120 = scmp.eq.s32.totalorder %s23, 0
      %p121 = por %p119, %p120
      %p122 = scmp.ne.s32.totalorder %s110, %s111
      %p123 = scmp.eq.s32.totalorder %s24, 1
      %p124 = por %p122, %p123
      %p126 = scmp.ne.s32.totalorder %s111, %s125
      %p127 = scmp.eq.s32.totalorder %s24, 0
      %p128 = por %p126, %p127
      %s130 = sadd.s32 %s129, 1
      %p133 = scmp.eq.s32.totalorder %s18, 1
      %p134 = scmp.ne.s32.totalorder %s129, %s131
      %p135 = scmp.eq.s32.totalorder %s18, 0
      %p136 = por %p134, %p135
      %p137 = scmp.ne.s32.totalorder %s129, %s131
      %p138 = scmp.eq.s32.totalorder %s23, 1
      %p139 = por %p137, %p138
      %p140 = scmp.ne.s32.totalorder %s131, %s132
      %p141 = scmp.eq.s32.totalorder %s23, 0
      %p142 = por %p140, %p141
      %p143 = scmp.ne.s32.totalorder %s131, %s132
      %p144 = scmp.eq.s32.totalorder %s24, 1
      %p145 = por %p143, %p144
      %p147 = scmp.ne.s32.totalorder %s132, %s146
      %p148 = scmp.eq.s32.totalorder %s24, 0
      %p149 = por %p147, %p148
      %s150 = ssub.s32 %s25, %s37
      %p151 = scmp.eq.s32.totalorder %s150, 0
      %s153 = sadd.s32 %s152, 1
      %s154 = scalar_select %p151, %s152, %s153
      %p157 = pneg %p151
      %p158 = scmp.eq.s32.totalorder %s18, 1
      %p159 = por %p157, %p158
      %p160 = scmp.ne.s32.totalorder %s152, %s155
      %p161 = scmp.eq.s32.totalorder %s18, 0
      %p162 = por %p160, %p161
      %p163 = scmp.ne.s32.totalorder %s152, %s155
      %p164 = scmp.eq.s32.totalorder %s23, 1
      %p165 = por %p163, %p164
      %p166 = scmp.ne.s32.totalorder %s155, %s156
      %p167 = scmp.eq.s32.totalorder %s23, 0
      %p168 = por %p166, %p167
      %p169 = scmp.ne.s32.totalorder %s155, %s156
      %p170 = scmp.eq.s32.totalorder %s24, 1
      %p171 = por %p169, %p170
      %p173 = scmp.ne.s32.totalorder %s156, %s172
      %p174 = scmp.eq.s32.totalorder %s24, 0
      %p175 = por %p173, %p174
      %p176 = scmp.le.s32.totalorder 1, %s18
      %p177 = scmp.lt.s32.totalorder %s18, 3
      %p178 = pnand %p176, %p177
      %p179 = pneg %p178
      // Predicated region
      $region9: #{oa_layer_forward.1} parent=5 // pred_check
        _
      $region10: #{oa_layer_forward.1} parent=5 // pred_check_branch
        %181 = sbr.rel (%p178) target = $region12
      $region11: #{oa_layer_forward.1} parent=5 // pred_region
        %s182 = ssub.s32 %s18, 1
        // Predicated region
        $region13: #{oa_layer_forward.1} parent=11 // pred_check
          %p183 = pneg %p79
        $region14: #{oa_layer_forward.1} parent=11 // pred_check_branch
          %185 = sbr.rel (%p183) target = $region16
        $region15: #{oa_layer_forward.1} parent=11 // pred_region
          _
        $region16: #{oa_layer_forward.1} parent=11 // pred_fallthru
          _
        // Predicated region
        $region17: #{oa_layer_forward.1} parent=11 // pred_check
          %p186 = pneg %p100
        $region18: #{oa_layer_forward.1} parent=11 // pred_check_branch
          %188 = sbr.rel (%p186) target = $region20
        $region19: #{oa_layer_forward.1} parent=11 // pred_region
          %190 = vsyncadd [#allocation7], 0
          %s192 = sshll.u32 %s2, 4
          %s193 = int_to_ptr.hbm [resolvable:$true] %s192
          %s194 = sshll.u32 [#allocation6], 4
          %s195 = int_to_ptr.vmem [resolvable:$true] %s194
          %197 = dma.hbm_to_vmem [thread:$0]  %s193, 16, %s195, [#allocation7]
        $region20: #{oa_layer_forward.1} parent=11 // pred_fallthru
          _
        // Predicated region
        $region21: #{oa_layer_forward.1} parent=11 // pred_check
          %p198 = pneg %p121
        $region22: #{oa_layer_forward.1} parent=11 // pred_check_branch
          %200 = sbr.rel (%p198) target = $region24
        $region23: #{oa_layer_forward.1} parent=11 // pred_region
          _
        $region24: #{oa_layer_forward.1} parent=11 // pred_fallthru
          _
        // Predicated region
        $region25: #{oa_layer_forward.1} parent=11 // pred_check
          %p201 = pneg %p142
        $region26: #{oa_layer_forward.1} parent=11 // pred_check_branch
          %203 = sbr.rel (%p201) target = $region28
        $region27: #{oa_layer_forward.1} parent=11 // pred_region
          %205 = vsyncadd [#allocation7], 0
          %s207 = sshll.u32 %s4, 4
          %s208 = int_to_ptr.hbm [resolvable:$true] %s207
          %s209 = sshll.u32 [#allocation8], 4
          %s210 = int_to_ptr.vmem [resolvable:$true] %s209
          %212 = dma.hbm_to_vmem [thread:$0]  %s208, 16, %s210, [#allocation7]
        $region28: #{oa_layer_forward.1} parent=11 // pred_fallthru
          _
      $region12: #{oa_layer_forward.1} parent=5 // pred_fallthru
        _
      %p213 = scmp.lt.s32.totalorder %s18, 2
      // Predicated region
      $region29: #{oa_layer_forward.1} parent=5 // pred_check
        %p214 = pneg %p213
      $region30: #{oa_layer_forward.1} parent=5 // pred_check_branch
        %216 = sbr.rel (%p214) target = $region32
      $region31: #{oa_layer_forward.1} parent=5 // pred_region
        // Predicated region
        $region33: #{oa_layer_forward.1} parent=31 // pred_check
          %p217 = pneg %p52
        $region34: #{oa_layer_forward.1} parent=31 // pred_check_branch
          %219 = sbr.rel (%p217) target = $region36
        $region35: #{oa_layer_forward.1} parent=31 // pred_region
          %s220 = sand.u32 %s42, 1
          %s221 = scalar_lea.sflag [#allocation4], %s220
          %s222 = sand.u32 %s42, 1
          %s223 = smul.addr %s222, 2048
          %s224 = scalar_lea.vmem [#allocation3], %s223
          %s225 = smul.u32 32, %s26
          %227 = vsyncadd %s221, 0
          %s228 = smul.addr %s225, 8
          %s229 = smul.addr %s25, 256
          %s230 = sadd.s32 %s228, %s229
          %s231 = smul.addr %s230, 8
          %s232 = scalar_lea.hbm %s0, %s231
          %s233 = sshll.u32 %s232, 4
          %s234 = int_to_ptr.hbm [resolvable:$true] %s233
          %s235 = sshll.u32 %s224, 4
          %s236 = int_to_ptr.vmem [resolvable:$true] %s235
          %241 = dma.hbm_to_vmem [thread:$0]  %s234, 32768, %s236, %s221, 1024, 1024, 64
        $region36: #{oa_layer_forward.1} parent=31 // pred_fallthru
          _
      $region32: #{oa_layer_forward.1} parent=5 // pred_fallthru
        _
      %p242 = scmp.le.s32.totalorder 1, %s18
      %p243 = scmp.lt.s32.totalorder %s18, 3
      %p244 = pnand %p242, %p243
      %p245 = pneg %p244
      // Predicated region
      $region37: #{oa_layer_forward.1} parent=5 // pred_check
        _
      $region38: #{oa_layer_forward.1} parent=5 // pred_check_branch
        %247 = sbr.rel (%p244) target = $region40
      $region39: #{oa_layer_forward.1} parent=5 // pred_region
        %s248 = ssub.s32 %s18, 1
        %s249 = sand.u32 %s45, 1
        %s250 = scalar_lea.sflag [#allocation4], %s249
        %s251 = sand.u32 %s45, 1
        %s252 = smul.addr %s251, 2048
        %s253 = scalar_lea.vmem [#allocation3], %s252
        // Predicated region
        $region41: #{oa_layer_forward.1} parent=39 // pred_check
          %p254 = pneg %p58
        $region42: #{oa_layer_forward.1} parent=39 // pred_check_branch
          %256 = sbr.rel (%p254) target = $region44
        $region43: #{oa_layer_forward.1} parent=39 // pred_region
          %258 = dma.done %s250, 32768
        $region44: #{oa_layer_forward.1} parent=39 // pred_fallthru
          _
        // Predicated region
        $region45: #{oa_layer_forward.1} parent=39 // pred_check
          %p259 = pneg %p100
        $region46: #{oa_layer_forward.1} parent=39 // pred_check_branch
          %261 = sbr.rel (%p259) target = $region48
        $region47: #{oa_layer_forward.1} parent=39 // pred_region
          %263 = dma.done [#allocation7], 16
        $region48: #{oa_layer_forward.1} parent=39 // pred_fallthru
          _
        // Predicated region
        $region49: #{oa_layer_forward.1} parent=39 // pred_check
          %p264 = pneg %p142
        $region50: #{oa_layer_forward.1} parent=39 // pred_check_branch
          %266 = sbr.rel (%p264) target = $region52
        $region51: #{oa_layer_forward.1} parent=39 // pred_region
          %268 = dma.done [#allocation7], 16
        $region52: #{oa_layer_forward.1} parent=39 // pred_fallthru
          _
        %s269 = sand.u32 %s45, 1
        %s270 = scalar_lea.sflag [#allocation4], %s269
        %s271 = sand.u32 %s45, 1
        %s272 = smul.addr %s271, 2048
        %s273 = scalar_lea.vmem [#allocation3], %s272
        %p274 = pneg %p58
        %p275 = pneg %p55
        %p276 = pneg %p79
        %p277 = pneg %p76
        %p278 = pneg %p100
        %p279 = pneg %p97
        %p280 = pneg %p121
        %p281 = pneg %p118
        %p282 = pneg %p142
        %p283 = pneg %p139
        %p284 = pneg %p168
        %p285 = pneg %p165
        %s286 = sand.u32 %s155, 1
        %s287 = scalar_lea.sflag [#allocation5], %s286
        %s288 = sand.u32 %s155, 1
        %s289 = scalar_lea.vmem [#allocation9], %s288
        %s290 = smul.u32 32, %s28
        %p291 = scmp.eq.s32.totalorder %s28, 0
        // Predicated region
        $region53: #{oa_layer_forward.1} parent=39 // pred_check
          %p292 = pneg %p291
        $region54: #{oa_layer_forward.1} parent=39 // pred_check_branch
          %294 = sbr.rel (%p292) target = $region56
        $region55: #{oa_layer_forward.1} parent=39 // pred_region
          %v295 = vlaneseq
          %vm296 = vcmp.ge.s32.totalorder %v295, 0
          %vm297 = vcmp.lt.s32.totalorder %v295, 960
          %vm298 = vmand %vm296, %vm297
          %299 = vst.msk [vmem:[#allocation2] sm:$0xff] %vm298, 0.0
        $region56: #{oa_layer_forward.1} parent=39 // pred_fallthru
          _
        %v300 = vld [vmem:[%s253] sm:$0xff]
        %v301 = vld [vmem:[%s253 + $0x8] sm:$0xff]
        %v302 = vld [vmem:[%s253 + $0x10] sm:$0xff]
        %v303 = vld [vmem:[%s253 + $0x18] sm:$0xff]
        %v304 = vld [vmem:[%s253 + $0x20] sm:$0xff]
        %v305 = vld [vmem:[%s253 + $0x28] sm:$0xff]
        %v306 = vld [vmem:[%s253 + $0x30] sm:$0xff]
        %v307 = vld [vmem:[%s253 + $0x38] sm:$0xff]
        %v308 = vld [vmem:[%s253 + $0x40] sm:$0xff]
        %v309 = vld [vmem:[%s253 + $0x48] sm:$0xff]
        %v310 = vld [vmem:[%s253 + $0x50] sm:$0xff]
        %v311 = vld [vmem:[%s253 + $0x58] sm:$0xff]
        %v312 = vld [vmem:[%s253 + $0x60] sm:$0xff]
        %v313 = vld [vmem:[%s253 + $0x68] sm:$0xff]
        %v314 = vld [vmem:[%s253 + $0x70] sm:$0xff]
        %v315 = vld [vmem:[%s253 + $0x78] sm:$0xff]
        %v316 = vld [vmem:[%s253 + $0x80] sm:$0xff]
        %v317 = vld [vmem:[%s253 + $0x88] sm:$0xff]
        %v318 = vld [vmem:[%s253 + $0x90] sm:$0xff]
        %v319 = vld [vmem:[%s253 + $0x98] sm:$0xff]
        %v320 = vld [vmem:[%s253 + $0xa0] sm:$0xff]
        %v321 = vld [vmem:[%s253 + $0xa8] sm:$0xff]
        %v322 = vld [vmem:[%s253 + $0xb0] sm:$0xff]
        %v323 = vld [vmem:[%s253 + $0xb8] sm:$0xff]
        %v324 = vld [vmem:[%s253 + $0xc0] sm:$0xff]
        %v325 = vld [vmem:[%s253 + $0xc8] sm:$0xff]
        %v326 = vld [vmem:[%s253 + $0xd0] sm:$0xff]
        %v327 = vld [vmem:[%s253 + $0xd8] sm:$0xff]
        %v328 = vld [vmem:[%s253 + $0xe0] sm:$0xff]
        %v329 = vld [vmem:[%s253 + $0xe8] sm:$0xff]
        %v330 = vld [vmem:[%s253 + $0xf0] sm:$0xff]
        %v331 = vld [vmem:[%s253 + $0xf8] sm:$0xff]
        %v332 = vld [vmem:[%s253 + $0x100] sm:$0xff]
        %v333 = vld [vmem:[%s253 + $0x108] sm:$0xff]
        %v334 = vld [vmem:[%s253 + $0x110] sm:$0xff]
        %v335 = vld [vmem:[%s253 + $0x118] sm:$0xff]
        %v336 = vld [vmem:[%s253 + $0x120] sm:$0xff]
        %v337 = vld [vmem:[%s253 + $0x128] sm:$0xff]
        %v338 = vld [vmem:[%s253 + $0x130] sm:$0xff]
        %v339 = vld [vmem:[%s253 + $0x138] sm:$0xff]
        %v340 = vld [vmem:[%s253 + $0x140] sm:$0xff]
        %v341 = vld [vmem:[%s253 + $0x148] sm:$0xff]
        %v342 = vld [vmem:[%s253 + $0x150] sm:$0xff]
        %v343 = vld [vmem:[%s253 + $0x158] sm:$0xff]
        %v344 = vld [vmem:[%s253 + $0x160] sm:$0xff]
        %v345 = vld [vmem:[%s253 + $0x168] sm:$0xff]
        %v346 = vld [vmem:[%s253 + $0x170] sm:$0xff]
        %v347 = vld [vmem:[%s253 + $0x178] sm:$0xff]
        %v348 = vld [vmem:[%s253 + $0x180] sm:$0xff]
        %v349 = vld [vmem:[%s253 + $0x188] sm:$0xff]
        %v350 = vld [vmem:[%s253 + $0x190] sm:$0xff]
        %v351 = vld [vmem:[%s253 + $0x198] sm:$0xff]
        %v352 = vld [vmem:[%s253 + $0x1a0] sm:$0xff]
        %v353 = vld [vmem:[%s253 + $0x1a8] sm:$0xff]
        %v354 = vld [vmem:[%s253 + $0x1b0] sm:$0xff]
        %v355 = vld [vmem:[%s253 + $0x1b8] sm:$0xff]
        %v356 = vld [vmem:[%s253 + $0x1c0] sm:$0xff]
        %v357 = vld [vmem:[%s253 + $0x1c8] sm:$0xff]
        %v358 = vld [vmem:[%s253 + $0x1d0] sm:$0xff]
        %v359 = vld [vmem:[%s253 + $0x1d8] sm:$0xff]
        %v360 = vld [vmem:[%s253 + $0x1e0] sm:$0xff]
        %v361 = vld [vmem:[%s253 + $0x1e8] sm:$0xff]
        %v362 = vld [vmem:[%s253 + $0x1f0] sm:$0xff]
        %v363 = vld [vmem:[%s253 + $0x1f8] sm:$0xff]
        %v364 = vld [vmem:[%s253 + $0x200] sm:$0xff]
        %v365 = vld [vmem:[%s253 + $0x208] sm:$0xff]
        %v366 = vld [vmem:[%s253 + $0x210] sm:$0xff]
        %v367 = vld [vmem:[%s253 + $0x218] sm:$0xff]
        %v368 = vld [vmem:[%s253 + $0x220] sm:$0xff]
        %v369 = vld [vmem:[%s253 + $0x228] sm:$0xff]
        %v370 = vld [vmem:[%s253 + $0x230] sm:$0xff]
        %v371 = vld [vmem:[%s253 + $0x238] sm:$0xff]
        %v372 = vld [vmem:[%s253 + $0x240] sm:$0xff]
        %v373 = vld [vmem:[%s253 + $0x248] sm:$0xff]
        %v374 = vld [vmem:[%s253 + $0x250] sm:$0xff]
        %v375 = vld [vmem:[%s253 + $0x258] sm:$0xff]
        %v376 = vld [vmem:[%s253 + $0x260] sm:$0xff]
        %v377 = vld [vmem:[%s253 + $0x268] sm:$0xff]
        %v378 = vld [vmem:[%s253 + $0x270] sm:$0xff]
        %v379 = vld [vmem:[%s253 + $0x278] sm:$0xff]
        %v380 = vld [vmem:[%s253 + $0x280] sm:$0xff]
        %v381 = vld [vmem:[%s253 + $0x288] sm:$0xff]
        %v382 = vld [vmem:[%s253 + $0x290] sm:$0xff]
        %v383 = vld [vmem:[%s253 + $0x298] sm:$0xff]
        %v384 = vld [vmem:[%s253 + $0x2a0] sm:$0xff]
        %v385 = vld [vmem:[%s253 + $0x2a8] sm:$0xff]
        %v386 = vld [vmem:[%s253 + $0x2b0] sm:$0xff]
        %v387 = vld [vmem:[%s253 + $0x2b8] sm:$0xff]
        %v388 = vld [vmem:[%s253 + $0x2c0] sm:$0xff]
        %v389 = vld [vmem:[%s253 + $0x2c8] sm:$0xff]
        %v390 = vld [vmem:[%s253 + $0x2d0] sm:$0xff]
        %v391 = vld [vmem:[%s253 + $0x2d8] sm:$0xff]
        %v392 = vld [vmem:[%s253 + $0x2e0] sm:$0xff]
        %v393 = vld [vmem:[%s253 + $0x2e8] sm:$0xff]
        %v394 = vld [vmem:[%s253 + $0x2f0] sm:$0xff]
        %v395 = vld [vmem:[%s253 + $0x2f8] sm:$0xff]
        %v396 = vld [vmem:[%s253 + $0x300] sm:$0xff]
        %v397 = vld [vmem:[%s253 + $0x308] sm:$0xff]
        %v398 = vld [vmem:[%s253 + $0x310] sm:$0xff]
        %v399 = vld [vmem:[%s253 + $0x318] sm:$0xff]
        %v400 = vld [vmem:[%s253 + $0x320] sm:$0xff]
        %v401 = vld [vmem:[%s253 + $0x328] sm:$0xff]
        %v402 = vld [vmem:[%s253 + $0x330] sm:$0xff]
        %v403 = vld [vmem:[%s253 + $0x338] sm:$0xff]
        %v404 = vld [vmem:[%s253 + $0x340] sm:$0xff]
        %v405 = vld [vmem:[%s253 + $0x348] sm:$0xff]
        %v406 = vld [vmem:[%s253 + $0x350] sm:$0xff]
        %v407 = vld [vmem:[%s253 + $0x358] sm:$0xff]
        %v408 = vld [vmem:[%s253 + $0x360] sm:$0xff]
        %v409 = vld [vmem:[%s253 + $0x368] sm:$0xff]
        %v410 = vld [vmem:[%s253 + $0x370] sm:$0xff]
        %v411 = vld [vmem:[%s253 + $0x378] sm:$0xff]
        %v412 = vld [vmem:[%s253 + $0x380] sm:$0xff]
        %v413 = vld [vmem:[%s253 + $0x388] sm:$0xff]
        %v414 = vld [vmem:[%s253 + $0x390] sm:$0xff]
        %v415 = vld [vmem:[%s253 + $0x398] sm:$0xff]
        %v416 = vld [vmem:[%s253 + $0x3a0] sm:$0xff]
        %v417 = vld [vmem:[%s253 + $0x3a8] sm:$0xff]
        %v418 = vld [vmem:[%s253 + $0x3b0] sm:$0xff]
        %v419 = vld [vmem:[%s253 + $0x3b8] sm:$0xff]
        %v420 = vld [vmem:[%s253 + $0x3c0] sm:$0xff]
        %v421 = vld [vmem:[%s253 + $0x3c8] sm:$0xff]
        %v422 = vld [vmem:[%s253 + $0x3d0] sm:$0xff]
        %v423 = vld [vmem:[%s253 + $0x3d8] sm:$0xff]
        %v424 = vld [vmem:[%s253 + $0x3e0] sm:$0xff]
        %v425 = vld [vmem:[%s253 + $0x3e8] sm:$0xff]
        %v426 = vld [vmem:[%s253 + $0x3f0] sm:$0xff]
        %v427 = vld [vmem:[%s253 + $0x3f8] sm:$0xff]
        %v428 = vld [vmem:[%s253 + $0x400] sm:$0xff]
        %v429 = vld [vmem:[%s253 + $0x408] sm:$0xff]
        %v430 = vld [vmem:[%s253 + $0x410] sm:$0xff]
        %v431 = vld [vmem:[%s253 + $0x418] sm:$0xff]
        %v432 = vld [vmem:[%s253 + $0x420] sm:$0xff]
        %v433 = vld [vmem:[%s253 + $0x428] sm:$0xff]
        %v434 = vld [vmem:[%s253 + $0x430] sm:$0xff]
        %v435 = vld [vmem:[%s253 + $0x438] sm:$0xff]
        %v436 = vld [vmem:[%s253 + $0x440] sm:$0xff]
        %v437 = vld [vmem:[%s253 + $0x448] sm:$0xff]
        %v438 = vld [vmem:[%s253 + $0x450] sm:$0xff]
        %v439 = vld [vmem:[%s253 + $0x458] sm:$0xff]
        %v440 = vld [vmem:[%s253 + $0x460] sm:$0xff]
        %v441 = vld [vmem:[%s253 + $0x468] sm:$0xff]
        %v442 = vld [vmem:[%s253 + $0x470] sm:$0xff]
        %v443 = vld [vmem:[%s253 + $0x478] sm:$0xff]
        %v444 = vld [vmem:[%s253 + $0x480] sm:$0xff]
        %v445 = vld [vmem:[%s253 + $0x488] sm:$0xff]
        %v446 = vld [vmem:[%s253 + $0x490] sm:$0xff]
        %v447 = vld [vmem:[%s253 + $0x498] sm:$0xff]
        %v448 = vld [vmem:[%s253 + $0x4a0] sm:$0xff]
        %v449 = vld [vmem:[%s253 + $0x4a8] sm:$0xff]
        %v450 = vld [vmem:[%s253 + $0x4b0] sm:$0xff]
        %v451 = vld [vmem:[%s253 + $0x4b8] sm:$0xff]
        %v452 = vld [vmem:[%s253 + $0x4c0] sm:$0xff]
        %v453 = vld [vmem:[%s253 + $0x4c8] sm:$0xff]
        %v454 = vld [vmem:[%s253 + $0x4d0] sm:$0xff]
        %v455 = vld [vmem:[%s253 + $0x4d8] sm:$0xff]
        %v456 = vld [vmem:[%s253 + $0x4e0] sm:$0xff]
        %v457 = vld [vmem:[%s253 + $0x4e8] sm:$0xff]
        %v458 = vld [vmem:[%s253 + $0x4f0] sm:$0xff]
        %v459 = vld [vmem:[%s253 + $0x4f8] sm:$0xff]
        %v460 = vld [vmem:[%s253 + $0x500] sm:$0xff]
        %v461 = vld [vmem:[%s253 + $0x508] sm:$0xff]
        %v462 = vld [vmem:[%s253 + $0x510] sm:$0xff]
        %v463 = vld [vmem:[%s253 + $0x518] sm:$0xff]
        %v464 = vld [vmem:[%s253 + $0x520] sm:$0xff]
        %v465 = vld [vmem:[%s253 + $0x528] sm:$0xff]
        %v466 = vld [vmem:[%s253 + $0x530] sm:$0xff]
        %v467 = vld [vmem:[%s253 + $0x538] sm:$0xff]
        %v468 = vld [vmem:[%s253 + $0x540] sm:$0xff]
        %v469 = vld [vmem:[%s253 + $0x548] sm:$0xff]
        %v470 = vld [vmem:[%s253 + $0x550] sm:$0xff]
        %v471 = vld [vmem:[%s253 + $0x558] sm:$0xff]
        %v472 = vld [vmem:[%s253 + $0x560] sm:$0xff]
        %v473 = vld [vmem:[%s253 + $0x568] sm:$0xff]
        %v474 = vld [vmem:[%s253 + $0x570] sm:$0xff]
        %v475 = vld [vmem:[%s253 + $0x578] sm:$0xff]
        %v476 = vld [vmem:[%s253 + $0x580] sm:$0xff]
        %v477 = vld [vmem:[%s253 + $0x588] sm:$0xff]
        %v478 = vld [vmem:[%s253 + $0x590] sm:$0xff]
        %v479 = vld [vmem:[%s253 + $0x598] sm:$0xff]
        %v480 = vld [vmem:[%s253 + $0x5a0] sm:$0xff]
        %v481 = vld [vmem:[%s253 + $0x5a8] sm:$0xff]
        %v482 = vld [vmem:[%s253 + $0x5b0] sm:$0xff]
        %v483 = vld [vmem:[%s253 + $0x5b8] sm:$0xff]
        %v484 = vld [vmem:[%s253 + $0x5c0] sm:$0xff]
        %v485 = vld [vmem:[%s253 + $0x5c8] sm:$0xff]
        %v486 = vld [vmem:[%s253 + $0x5d0] sm:$0xff]
        %v487 = vld [vmem:[%s253 + $0x5d8] sm:$0xff]
        %v488 = vld [vmem:[%s253 + $0x5e0] sm:$0xff]
        %v489 = vld [vmem:[%s253 + $0x5e8] sm:$0xff]
        %v490 = vld [vmem:[%s253 + $0x5f0] sm:$0xff]
        %v491 = vld [vmem:[%s253 + $0x5f8] sm:$0xff]
        %v492 = vld [vmem:[%s253 + $0x600] sm:$0xff]
        %v493 = vld [vmem:[%s253 + $0x608] sm:$0xff]
        %v494 = vld [vmem:[%s253 + $0x610] sm:$0xff]
        %v495 = vld [vmem:[%s253 + $0x618] sm:$0xff]
        %v496 = vld [vmem:[%s253 + $0x620] sm:$0xff]
        %v497 = vld [vmem:[%s253 + $0x628] sm:$0xff]
        %v498 = vld [vmem:[%s253 + $0x630] sm:$0xff]
        %v499 = vld [vmem:[%s253 + $0x638] sm:$0xff]
        %v500 = vld [vmem:[%s253 + $0x640] sm:$0xff]
        %v501 = vld [vmem:[%s253 + $0x648] sm:$0xff]
        %v502 = vld [vmem:[%s253 + $0x650] sm:$0xff]
        %v503 = vld [vmem:[%s253 + $0x658] sm:$0xff]
        %v504 = vld [vmem:[%s253 + $0x660] sm:$0xff]
        %v505 = vld [vmem:[%s253 + $0x668] sm:$0xff]
        %v506 = vld [vmem:[%s253 + $0x670] sm:$0xff]
        %v507 = vld [vmem:[%s253 + $0x678] sm:$0xff]
        %v508 = vld [vmem:[%s253 + $0x680] sm:$0xff]
        %v509 = vld [vmem:[%s253 + $0x688] sm:$0xff]
        %v510 = vld [vmem:[%s253 + $0x690] sm:$0xff]
        %v511 = vld [vmem:[%s253 + $0x698] sm:$0xff]
        %v512 = vld [vmem:[%s253 + $0x6a0] sm:$0xff]
        %v513 = vld [vmem:[%s253 + $0x6a8] sm:$0xff]
        %v514 = vld [vmem:[%s253 + $0x6b0] sm:$0xff]
        %v515 = vld [vmem:[%s253 + $0x6b8] sm:$0xff]
        %v516 = vld [vmem:[%s253 + $0x6c0] sm:$0xff]
        %v517 = vld [vmem:[%s253 + $0x6c8] sm:$0xff]
        %v518 = vld [vmem:[%s253 + $0x6d0] sm:$0xff]
        %v519 = vld [vmem:[%s253 + $0x6d8] sm:$0xff]
        %v520 = vld [vmem:[%s253 + $0x6e0] sm:$0xff]
        %v521 = vld [vmem:[%s253 + $0x6e8] sm:$0xff]
        %v522 = vld [vmem:[%s253 + $0x6f0] sm:$0xff]
        %v523 = vld [vmem:[%s253 + $0x6f8] sm:$0xff]
        %v524 = vld [vmem:[%s253 + $0x700] sm:$0xff]
        %v525 = vld [vmem:[%s253 + $0x708] sm:$0xff]
        %v526 = vld [vmem:[%s253 + $0x710] sm:$0xff]
        %v527 = vld [vmem:[%s253 + $0x718] sm:$0xff]
        %v528 = vld [vmem:[%s253 + $0x720] sm:$0xff]
        %v529 = vld [vmem:[%s253 + $0x728] sm:$0xff]
        %v530 = vld [vmem:[%s253 + $0x730] sm:$0xff]
        %v531 = vld [vmem:[%s253 + $0x738] sm:$0xff]
        %v532 = vld [vmem:[%s253 + $0x740] sm:$0xff]
        %v533 = vld [vmem:[%s253 + $0x748] sm:$0xff]
        %v534 = vld [vmem:[%s253 + $0x750] sm:$0xff]
        %v535 = vld [vmem:[%s253 + $0x758] sm:$0xff]
        %v536 = vld [vmem:[%s253 + $0x760] sm:$0xff]
        %v537 = vld [vmem:[%s253 + $0x768] sm:$0xff]
        %v538 = vld [vmem:[%s253 + $0x770] sm:$0xff]
        %v539 = vld [vmem:[%s253 + $0x778] sm:$0xff]
        %v540 = vld [vmem:[%s253 + $0x780] sm:$0xff]
        %v541 = vld [vmem:[%s253 + $0x788] sm:$0xff]
        %v542 = vld [vmem:[%s253 + $0x790] sm:$0xff]
        %v543 = vld [vmem:[%s253 + $0x798] sm:$0xff]
        %v544 = vld [vmem:[%s253 + $0x7a0] sm:$0xff]
        %v545 = vld [vmem:[%s253 + $0x7a8] sm:$0xff]
        %v546 = vld [vmem:[%s253 + $0x7b0] sm:$0xff]
        %v547 = vld [vmem:[%s253 + $0x7b8] sm:$0xff]
        %v548 = vld [vmem:[%s253 + $0x7c0] sm:$0xff]
        %v549 = vld [vmem:[%s253 + $0x7c8] sm:$0xff]
        %v550 = vld [vmem:[%s253 + $0x7d0] sm:$0xff]
        %v551 = vld [vmem:[%s253 + $0x7d8] sm:$0xff]
        %v552 = vld [vmem:[%s253 + $0x7e0] sm:$0xff]
        %v553 = vld [vmem:[%s253 + $0x7e8] sm:$0xff]
        %v554 = vld [vmem:[%s253 + $0x7f0] sm:$0xff]
        %v555 = vld [vmem:[%s253 + $0x7f8] sm:$0xff]
        %v556 = vld [vmem:[#allocation2] sm:$0xff]
        %557 = vmatpush.msra.mxu0 %v420
        %558 = vmatpush.msra.mxu0 %v412
        %559 = vmatpush.msra.mxu0 %v404
        %560 = vmatpush.msra.mxu0 %v396
        %561 = vmatpush.msra.mxu0 %v388
        %562 = vmatpush.msra.mxu0 %v380
        %563 = vmatpush.msra.mxu0 %v372
        %564 = vmatpush.msra.mxu0 %v364
        %565 = vmatpush.msra.mxu0 %v356
        %566 = vmatpush.msra.mxu0 %v348
        %567 = vmatpush.msra.mxu0 %v340
        %568 = vmatpush.msra.mxu0 %v332
        %569 = vmatpush.msra.mxu0 %v324
        %570 = vmatpush.msra.mxu0 %v316
        %571 = vmatpush.msra.mxu0 %v308
        %572 = vmatpush.msra.mxu0 %v300
        %573 = vmatmul.f32.gmra.mxu0 1.0
        %v574 = vpop.f32.mrf.mxu0
        %v575 = vadd.f32 0.0, %v574
        %576 = vdwg.mxu0
        %577 = vmatpush.msra.mxu0 %v548
        %578 = vmatpush.msra.mxu0 %v540
        %579 = vmatpush.msra.mxu0 %v532
        %580 = vmatpush.msra.mxu0 %v524
        %581 = vmatpush.msra.mxu0 %v516
        %582 = vmatpush.msra.mxu0 %v508
        %583 = vmatpush.msra.mxu0 %v500
        %584 = vmatpush.msra.mxu0 %v492
        %585 = vmatpush.msra.mxu0 %v484
        %586 = vmatpush.msra.mxu0 %v476
        %587 = vmatpush.msra.mxu0 %v468
        %588 = vmatpush.msra.mxu0 %v460
        %589 = vmatpush.msra.mxu0 %v452
        %590 = vmatpush.msra.mxu0 %v444
        %591 = vmatpush.msra.mxu0 %v436
        %592 = vmatpush.msra.mxu0 %v428
        %593 = vmatmul.f32.gmra.mxu0 1.0
        %v594 = vpop.f32.mrf.mxu0
        %v595 = vadd.f32 %v575, %v594
        %596 = vdwg.mxu0
        %597 = vmatpush.msra.mxu0 %v421
        %598 = vmatpush.msra.mxu0 %v413
        %599 = vmatpush.msra.mxu0 %v405
        %600 = vmatpush.msra.mxu0 %v397
        %601 = vmatpush.msra.mxu0 %v389
        %602 = vmatpush.msra.mxu0 %v381
        %603 = vmatpush.msra.mxu0 %v373
        %604 = vmatpush.msra.mxu0 %v365
        %605 = vmatpush.msra.mxu0 %v357
        %606 = vmatpush.msra.mxu0 %v349
        %607 = vmatpush.msra.mxu0 %v341
        %608 = vmatpush.msra.mxu0 %v333
        %609 = vmatpush.msra.mxu0 %v325
        %610 = vmatpush.msra.mxu0 %v317
        %611 = vmatpush.msra.mxu0 %v309
        %612 = vmatpush.msra.mxu0 %v301
        %613 = vmatmul.f32.gmra.mxu0 1.0
        %v614 = vpop.f32.mrf.mxu0
        %v615 = vadd.f32 0.0, %v614
        %616 = vdwg.mxu0
        %617 = vmatpush.msra.mxu0 %v549
        %618 = vmatpush.msra.mxu0 %v541
        %619 = vmatpush.msra.mxu0 %v533
        %620 = vmatpush.msra.mxu0 %v525
        %621 = vmatpush.msra.mxu0 %v517
        %622 = vmatpush.msra.mxu0 %v509
        %623 = vmatpush.msra.mxu0 %v501
        %624 = vmatpush.msra.mxu0 %v493
        %625 = vmatpush.msra.mxu0 %v485
        %626 = vmatpush.msra.mxu0 %v477
        %627 = vmatpush.msra.mxu0 %v469
        %628 = vmatpush.msra.mxu0 %v461
        %629 = vmatpush.msra.mxu0 %v453
        %630 = vmatpush.msra.mxu0 %v445
        %631 = vmatpush.msra.mxu0 %v437
        %632 = vmatpush.msra.mxu0 %v429
        %633 = vmatmul.f32.gmra.mxu0 1.0
        %v634 = vpop.f32.mrf.mxu0
        %v635 = vadd.f32 %v615, %v634
        %636 = vdwg.mxu0
        %637 = vmatpush.msra.mxu0 %v422
        %638 = vmatpush.msra.mxu0 %v414
        %639 = vmatpush.msra.mxu0 %v406
        %640 = vmatpush.msra.mxu0 %v398
        %641 = vmatpush.msra.mxu0 %v390
        %642 = vmatpush.msra.mxu0 %v382
        %643 = vmatpush.msra.mxu0 %v374
        %644 = vmatpush.msra.mxu0 %v366
        %645 = vmatpush.msra.mxu0 %v358
        %646 = vmatpush.msra.mxu0 %v350
        %647 = vmatpush.msra.mxu0 %v342
        %648 = vmatpush.msra.mxu0 %v334
        %649 = vmatpush.msra.mxu0 %v326
        %650 = vmatpush.msra.mxu0 %v318
        %651 = vmatpush.msra.mxu0 %v310
        %652 = vmatpush.msra.mxu0 %v302
        %653 = vmatmul.f32.gmra.mxu0 1.0
        %v654 = vpop.f32.mrf.mxu0
        %v655 = vadd.f32 0.0, %v654
        %656 = vdwg.mxu0
        %657 = vmatpush.msra.mxu0 %v550
        %658 = vmatpush.msra.mxu0 %v542
        %659 = vmatpush.msra.mxu0 %v534
        %660 = vmatpush.msra.mxu0 %v526
        %661 = vmatpush.msra.mxu0 %v518
        %662 = vmatpush.msra.mxu0 %v510
        %663 = vmatpush.msra.mxu0 %v502
        %664 = vmatpush.msra.mxu0 %v494
        %665 = vmatpush.msra.mxu0 %v486
        %666 = vmatpush.msra.mxu0 %v478
        %667 = vmatpush.msra.mxu0 %v470
        %668 = vmatpush.msra.mxu0 %v462
        %669 = vmatpush.msra.mxu0 %v454
        %670 = vmatpush.msra.mxu0 %v446
        %671 = vmatpush.msra.mxu0 %v438
        %672 = vmatpush.msra.mxu0 %v430
        %673 = vmatmul.f32.gmra.mxu0 1.0
        %v674 = vpop.f32.mrf.mxu0
        %v675 = vadd.f32 %v655, %v674
        %676 = vdwg.mxu0
        %677 = vmatpush.msra.mxu0 %v423
        %678 = vmatpush.msra.mxu0 %v415
        %679 = vmatpush.msra.mxu0 %v407
        %680 = vmatpush.msra.mxu0 %v399
        %681 = vmatpush.msra.mxu0 %v391
        %682 = vmatpush.msra.mxu0 %v383
        %683 = vmatpush.msra.mxu0 %v375
        %684 = vmatpush.msra.mxu0 %v367
        %685 = vmatpush.msra.mxu0 %v359
        %686 = vmatpush.msra.mxu0 %v351
        %687 = vmatpush.msra.mxu0 %v343
        %688 = vmatpush.msra.mxu0 %v335
        %689 = vmatpush.msra.mxu0 %v327
        %690 = vmatpush.msra.mxu0 %v319
        %691 = vmatpush.msra.mxu0 %v311
        %692 = vmatpush.msra.mxu0 %v303
        %693 = vmatmul.f32.gmra.mxu0 1.0
        %v694 = vpop.f32.mrf.mxu0
        %v695 = vadd.f32 0.0, %v694
        %696 = vdwg.mxu0
        %697 = vmatpush.msra.mxu0 %v551
        %698 = vmatpush.msra.mxu0 %v543
        %699 = vmatpush.msra.mxu0 %v535
        %700 = vmatpush.msra.mxu0 %v527
        %701 = vmatpush.msra.mxu0 %v519
        %702 = vmatpush.msra.mxu0 %v511
        %703 = vmatpush.msra.mxu0 %v503
        %704 = vmatpush.msra.mxu0 %v495
        %705 = vmatpush.msra.mxu0 %v487
        %706 = vmatpush.msra.mxu0 %v479
        %707 = vmatpush.msra.mxu0 %v471
        %708 = vmatpush.msra.mxu0 %v463
        %709 = vmatpush.msra.mxu0 %v455
        %710 = vmatpush.msra.mxu0 %v447
        %711 = vmatpush.msra.mxu0 %v439
        %712 = vmatpush.msra.mxu0 %v431
        %713 = vmatmul.f32.gmra.mxu0 1.0
        %v714 = vpop.f32.mrf.mxu0
        %v715 = vadd.f32 %v695, %v714
        %716 = vdwg.mxu0
        %717 = vmatpush.msra.mxu0 %v424
        %718 = vmatpush.msra.mxu0 %v416
        %719 = vmatpush.msra.mxu0 %v408
        %720 = vmatpush.msra.mxu0 %v400
        %721 = vmatpush.msra.mxu0 %v392
        %722 = vmatpush.msra.mxu0 %v384
        %723 = vmatpush.msra.mxu0 %v376
        %724 = vmatpush.msra.mxu0 %v368
        %725 = vmatpush.msra.mxu0 %v360
        %726 = vmatpush.msra.mxu0 %v352
        %727 = vmatpush.msra.mxu0 %v344
        %728 = vmatpush.msra.mxu0 %v336
        %729 = vmatpush.msra.mxu0 %v328
        %730 = vmatpush.msra.mxu0 %v320
        %731 = vmatpush.msra.mxu0 %v312
        %732 = vmatpush.msra.mxu0 %v304
        %733 = vmatmul.f32.gmra.mxu0 1.0
        %v734 = vpop.f32.mrf.mxu0
        %v735 = vadd.f32 0.0, %v734
        %736 = vdwg.mxu0
        %737 = vmatpush.msra.mxu0 %v552
        %738 = vmatpush.msra.mxu0 %v544
        %739 = vmatpush.msra.mxu0 %v536
        %740 = vmatpush.msra.mxu0 %v528
        %741 = vmatpush.msra.mxu0 %v520
        %742 = vmatpush.msra.mxu0 %v512
        %743 = vmatpush.msra.mxu0 %v504
        %744 = vmatpush.msra.mxu0 %v496
        %745 = vmatpush.msra.mxu0 %v488
        %746 = vmatpush.msra.mxu0 %v480
        %747 = vmatpush.msra.mxu0 %v472
        %748 = vmatpush.msra.mxu0 %v464
        %749 = vmatpush.msra.mxu0 %v456
        %750 = vmatpush.msra.mxu0 %v448
        %751 = vmatpush.msra.mxu0 %v440
        %752 = vmatpush.msra.mxu0 %v432
        %753 = vmatmul.f32.gmra.mxu0 1.0
        %v754 = vpop.f32.mrf.mxu0
        %v755 = vadd.f32 %v735, %v754
        %756 = vdwg.mxu0
        %757 = vmatpush.msra.mxu0 %v425
        %758 = vmatpush.msra.mxu0 %v417
        %759 = vmatpush.msra.mxu0 %v409
        %760 = vmatpush.msra.mxu0 %v401
        %761 = vmatpush.msra.mxu0 %v393
        %762 = vmatpush.msra.mxu0 %v385
        %763 = vmatpush.msra.mxu0 %v377
        %764 = vmatpush.msra.mxu0 %v369
        %765 = vmatpush.msra.mxu0 %v361
        %766 = vmatpush.msra.mxu0 %v353
        %767 = vmatpush.msra.mxu0 %v345
        %768 = vmatpush.msra.mxu0 %v337
        %769 = vmatpush.msra.mxu0 %v329
        %770 = vmatpush.msra.mxu0 %v321
        %771 = vmatpush.msra.mxu0 %v313
        %772 = vmatpush.msra.mxu0 %v305
        %773 = vmatmul.f32.gmra.mxu0 1.0
        %v774 = vpop.f32.mrf.mxu0
        %v775 = vadd.f32 0.0, %v774
        %776 = vdwg.mxu0
        %777 = vmatpush.msra.mxu0 %v553
        %778 = vmatpush.msra.mxu0 %v545
        %779 = vmatpush.msra.mxu0 %v537
        %780 = vmatpush.msra.mxu0 %v529
        %781 = vmatpush.msra.mxu0 %v521
        %782 = vmatpush.msra.mxu0 %v513
        %783 = vmatpush.msra.mxu0 %v505
        %784 = vmatpush.msra.mxu0 %v497
        %785 = vmatpush.msra.mxu0 %v489
        %786 = vmatpush.msra.mxu0 %v481
        %787 = vmatpush.msra.mxu0 %v473
        %788 = vmatpush.msra.mxu0 %v465
        %789 = vmatpush.msra.mxu0 %v457
        %790 = vmatpush.msra.mxu0 %v449
        %791 = vmatpush.msra.mxu0 %v441
        %792 = vmatpush.msra.mxu0 %v433
        %793 = vmatmul.f32.gmra.mxu0 1.0
        %v794 = vpop.f32.mrf.mxu0
        %v795 = vadd.f32 %v775, %v794
        %796 = vdwg.mxu0
        %797 = vmatpush.msra.mxu0 %v426
        %798 = vmatpush.msra.mxu0 %v418
        %799 = vmatpush.msra.mxu0 %v410
        %800 = vmatpush.msra.mxu0 %v402
        %801 = vmatpush.msra.mxu0 %v394
        %802 = vmatpush.msra.mxu0 %v386
        %803 = vmatpush.msra.mxu0 %v378
        %804 = vmatpush.msra.mxu0 %v370
        %805 = vmatpush.msra.mxu0 %v362
        %806 = vmatpush.msra.mxu0 %v354
        %807 = vmatpush.msra.mxu0 %v346
        %808 = vmatpush.msra.mxu0 %v338
        %809 = vmatpush.msra.mxu0 %v330
        %810 = vmatpush.msra.mxu0 %v322
        %811 = vmatpush.msra.mxu0 %v314
        %812 = vmatpush.msra.mxu0 %v306
        %813 = vmatmul.f32.gmra.mxu0 1.0
        %v814 = vpop.f32.mrf.mxu0
        %v815 = vadd.f32 0.0, %v814
        %816 = vdwg.mxu0
        %817 = vmatpush.msra.mxu0 %v554
        %818 = vmatpush.msra.mxu0 %v546
        %819 = vmatpush.msra.mxu0 %v538
        %820 = vmatpush.msra.mxu0 %v530
        %821 = vmatpush.msra.mxu0 %v522
        %822 = vmatpush.msra.mxu0 %v514
        %823 = vmatpush.msra.mxu0 %v506
        %824 = vmatpush.msra.mxu0 %v498
        %825 = vmatpush.msra.mxu0 %v490
        %826 = vmatpush.msra.mxu0 %v482
        %827 = vmatpush.msra.mxu0 %v474
        %828 = vmatpush.msra.mxu0 %v466
        %829 = vmatpush.msra.mxu0 %v458
        %830 = vmatpush.msra.mxu0 %v450
        %831 = vmatpush.msra.mxu0 %v442
        %832 = vmatpush.msra.mxu0 %v434
        %833 = vmatmul.f32.gmra.mxu0 1.0
        %v834 = vpop.f32.mrf.mxu0
        %v835 = vadd.f32 %v815, %v834
        %836 = vdwg.mxu0
        %837 = vmatpush.msra.mxu0 %v427
        %838 = vmatpush.msra.mxu0 %v419
        %839 = vmatpush.msra.mxu0 %v411
        %840 = vmatpush.msra.mxu0 %v403
        %841 = vmatpush.msra.mxu0 %v395
        %842 = vmatpush.msra.mxu0 %v387
        %843 = vmatpush.msra.mxu0 %v379
        %844 = vmatpush.msra.mxu0 %v371
        %845 = vmatpush.msra.mxu0 %v363
        %846 = vmatpush.msra.mxu0 %v355
        %847 = vmatpush.msra.mxu0 %v347
        %848 = vmatpush.msra.mxu0 %v339
        %849 = vmatpush.msra.mxu0 %v331
        %850 = vmatpush.msra.mxu0 %v323
        %851 = vmatpush.msra.mxu0 %v315
        %852 = vmatpush.msra.mxu0 %v307
        %853 = vmatmul.f32.gmra.mxu0 1.0
        %v854 = vpop.f32.mrf.mxu0
        %v855 = vadd.f32 0.0, %v854
        %856 = vdwg.mxu0
        %857 = vmatpush.msra.mxu0 %v555
        %858 = vmatpush.msra.mxu0 %v547
        %859 = vmatpush.msra.mxu0 %v539
        %860 = vmatpush.msra.mxu0 %v531
        %861 = vmatpush.msra.mxu0 %v523
        %862 = vmatpush.msra.mxu0 %v515
        %863 = vmatpush.msra.mxu0 %v507
        %864 = vmatpush.msra.mxu0 %v499
        %865 = vmatpush.msra.mxu0 %v491
        %866 = vmatpush.msra.mxu0 %v483
        %867 = vmatpush.msra.mxu0 %v475
        %868 = vmatpush.msra.mxu0 %v467
        %869 = vmatpush.msra.mxu0 %v459
        %870 = vmatpush.msra.mxu0 %v451
        %871 = vmatpush.msra.mxu0 %v443
        %872 = vmatpush.msra.mxu0 %v435
        %873 = vmatmul.f32.gmra.mxu0 1.0
        %v874 = vpop.f32.mrf.mxu0
        %v875 = vadd.f32 %v855, %v874
        %876 = vdwg.mxu0
        %v885 = vrot.slane %v635, 7
        %v886 = vrot.slane %v675, 6
        %v887 = vrot.slane %v715, 5
        %v888 = vrot.slane %v755, 4
        %v889 = vrot.slane %v795, 3
        %v890 = vrot.slane %v835, 2
        %v891 = vrot.slane %v875, 1
        %vm892 = vcmask 1040384
        %v893 = vsel %vm892, %v595, %v885
        %vm894 = vcmask 1042434
        %v895 = vsel %vm894, %v886, %v887
        %vm896 = vcmask 1041408
        %v897 = vsel %vm896, %v893, %v895
        %vm898 = vcmask 1044484
        %v899 = vsel %vm898, %v888, %v889
        %vm900 = vcmask 1046534
        %v901 = vsel %vm900, %v890, %v891
        %vm902 = vcmask 1045508
        %v903 = vsel %vm902, %v899, %v901
        %vm904 = vcmask 1043456
        %v905 = vsel %vm904, %v897, %v903
        %v907 = vadd.f32 %v556, %v905
        %v908 = vlaneseq
        %vm909 = vcmp.ge.s32.totalorder %v908, 0
        %vm910 = vcmp.lt.s32.totalorder %v908, 960
        %vm911 = vmand %vm909, %vm910
        %912 = vst.msk [vmem:[#allocation2] sm:$0xff] %vm911, %v907
        // Predicated region
        $region57: #{oa_layer_forward.1} parent=39 // pred_check
          %p913 = pneg %p291
        $region58: #{oa_layer_forward.1} parent=39 // pred_check_branch
          %915 = sbr.rel (%p913) target = $region60
        $region59: #{oa_layer_forward.1} parent=39 // pred_region
          %v916 = vld [vmem:[#allocation2] sm:$0xff]
          %v917 = vmul.f32 %v916, 0.00390625
          %v918 = vld [vmem:[%s1] sm:$0xff]
          %v919 = vld [vmem:[%s1 + $0x8] sm:$0xff]
          %v920 = vld [vmem:[%s1 + $0x10] sm:$0xff]
          %v921 = vld [vmem:[%s1 + $0x18] sm:$0xff]
          %v922 = vld [vmem:[%s1 + $0x20] sm:$0xff]
          %v923 = vld [vmem:[%s1 + $0x28] sm:$0xff]
          %v924 = vld [vmem:[%s1 + $0x30] sm:$0xff]
          %v925 = vld [vmem:[%s1 + $0x38] sm:$0xff]
          %v926 = vld [vmem:[%s1 + $0x40] sm:$0xff]
          %v927 = vld [vmem:[%s1 + $0x48] sm:$0xff]
          %v928 = vld [vmem:[%s1 + $0x50] sm:$0xff]
          %v929 = vld [vmem:[%s1 + $0x58] sm:$0xff]
          %v930 = vld [vmem:[%s1 + $0x60] sm:$0xff]
          %v931 = vld [vmem:[%s1 + $0x68] sm:$0xff]
          %v932 = vld [vmem:[%s1 + $0x70] sm:$0xff]
          %v933 = vld [vmem:[%s1 + $0x78] sm:$0xff]
          %v934 = vld [vmem:[%s1 + $0x80] sm:$0xff]
          %v935 = vld [vmem:[%s1 + $0x88] sm:$0xff]
          %v936 = vld [vmem:[%s1 + $0x90] sm:$0xff]
          %v937 = vld [vmem:[%s1 + $0x98] sm:$0xff]
          %v938 = vld [vmem:[%s1 + $0xa0] sm:$0xff]
          %v939 = vld [vmem:[%s1 + $0xa8] sm:$0xff]
          %v940 = vld [vmem:[%s1 + $0xb0] sm:$0xff]
          %v941 = vld [vmem:[%s1 + $0xb8] sm:$0xff]
          %v942 = vld [vmem:[%s1 + $0xc0] sm:$0xff]
          %v943 = vld [vmem:[%s1 + $0xc8] sm:$0xff]
          %v944 = vld [vmem:[%s1 + $0xd0] sm:$0xff]
          %v945 = vld [vmem:[%s1 + $0xd8] sm:$0xff]
          %v946 = vld [vmem:[%s1 + $0xe0] sm:$0xff]
          %v947 = vld [vmem:[%s1 + $0xe8] sm:$0xff]
          %v948 = vld [vmem:[%s1 + $0xf0] sm:$0xff]
          %v949 = vld [vmem:[%s1 + $0xf8] sm:$0xff]
          %v950 = vld [vmem:[%s1 + $0x100] sm:$0xff]
          %v951 = vld [vmem:[%s1 + $0x108] sm:$0xff]
          %v952 = vld [vmem:[%s1 + $0x110] sm:$0xff]
          %v953 = vld [vmem:[%s1 + $0x118] sm:$0xff]
          %v954 = vld [vmem:[%s1 + $0x120] sm:$0xff]
          %v955 = vld [vmem:[%s1 + $0x128] sm:$0xff]
          %v956 = vld [vmem:[%s1 + $0x130] sm:$0xff]
          %v957 = vld [vmem:[%s1 + $0x138] sm:$0xff]
          %v958 = vld [vmem:[%s1 + $0x140] sm:$0xff]
          %v959 = vld [vmem:[%s1 + $0x148] sm:$0xff]
          %v960 = vld [vmem:[%s1 + $0x150] sm:$0xff]
          %v961 = vld [vmem:[%s1 + $0x158] sm:$0xff]
          %v962 = vld [vmem:[%s1 + $0x160] sm:$0xff]
          %v963 = vld [vmem:[%s1 + $0x168] sm:$0xff]
          %v964 = vld [vmem:[%s1 + $0x170] sm:$0xff]
          %v965 = vld [vmem:[%s1 + $0x178] sm:$0xff]
          %v966 = vld [vmem:[%s1 + $0x180] sm:$0xff]
          %v967 = vld [vmem:[%s1 + $0x188] sm:$0xff]
          %v968 = vld [vmem:[%s1 + $0x190] sm:$0xff]
          %v969 = vld [vmem:[%s1 + $0x198] sm:$0xff]
          %v970 = vld [vmem:[%s1 + $0x1a0] sm:$0xff]
          %v971 = vld [vmem:[%s1 + $0x1a8] sm:$0xff]
          %v972 = vld [vmem:[%s1 + $0x1b0] sm:$0xff]
          %v973 = vld [vmem:[%s1 + $0x1b8] sm:$0xff]
          %v974 = vld [vmem:[%s1 + $0x1c0] sm:$0xff]
          %v975 = vld [vmem:[%s1 + $0x1c8] sm:$0xff]
          %v976 = vld [vmem:[%s1 + $0x1d0] sm:$0xff]
          %v977 = vld [vmem:[%s1 + $0x1d8] sm:$0xff]
          %v978 = vld [vmem:[%s1 + $0x1e0] sm:$0xff]
          %v979 = vld [vmem:[%s1 + $0x1e8] sm:$0xff]
          %v980 = vld [vmem:[%s1 + $0x1f0] sm:$0xff]
          %v981 = vld [vmem:[%s1 + $0x1f8] sm:$0xff]
          %v982 = vld [vmem:[%s1 + $0x200] sm:$0xff]
          %v983 = vld [vmem:[%s1 + $0x208] sm:$0xff]
          %v984 = vld [vmem:[%s1 + $0x210] sm:$0xff]
          %v985 = vld [vmem:[%s1 + $0x218] sm:$0xff]
          %v986 = vld [vmem:[%s1 + $0x220] sm:$0xff]
          %v987 = vld [vmem:[%s1 + $0x228] sm:$0xff]
          %v988 = vld [vmem:[%s1 + $0x230] sm:$0xff]
          %v989 = vld [vmem:[%s1 + $0x238] sm:$0xff]
          %v990 = vld [vmem:[%s1 + $0x240] sm:$0xff]
          %v991 = vld [vmem:[%s1 + $0x248] sm:$0xff]
          %v992 = vld [vmem:[%s1 + $0x250] sm:$0xff]
          %v993 = vld [vmem:[%s1 + $0x258] sm:$0xff]
          %v994 = vld [vmem:[%s1 + $0x260] sm:$0xff]
          %v995 = vld [vmem:[%s1 + $0x268] sm:$0xff]
          %v996 = vld [vmem:[%s1 + $0x270] sm:$0xff]
          %v997 = vld [vmem:[%s1 + $0x278] sm:$0xff]
          %v998 = vld [vmem:[%s1 + $0x280] sm:$0xff]
          %v999 = vld [vmem:[%s1 + $0x288] sm:$0xff]
          %v1000 = vld [vmem:[%s1 + $0x290] sm:$0xff]
          %v1001 = vld [vmem:[%s1 + $0x298] sm:$0xff]
          %v1002 = vld [vmem:[%s1 + $0x2a0] sm:$0xff]
          %v1003 = vld [vmem:[%s1 + $0x2a8] sm:$0xff]
          %v1004 = vld [vmem:[%s1 + $0x2b0] sm:$0xff]
          %v1005 = vld [vmem:[%s1 + $0x2b8] sm:$0xff]
          %v1006 = vld [vmem:[%s1 + $0x2c0] sm:$0xff]
          %v1007 = vld [vmem:[%s1 + $0x2c8] sm:$0xff]
          %v1008 = vld [vmem:[%s1 + $0x2d0] sm:$0xff]
          %v1009 = vld [vmem:[%s1 + $0x2d8] sm:$0xff]
          %v1010 = vld [vmem:[%s1 + $0x2e0] sm:$0xff]
          %v1011 = vld [vmem:[%s1 + $0x2e8] sm:$0xff]
          %v1012 = vld [vmem:[%s1 + $0x2f0] sm:$0xff]
          %v1013 = vld [vmem:[%s1 + $0x2f8] sm:$0xff]
          %v1014 = vld [vmem:[%s1 + $0x300] sm:$0xff]
          %v1015 = vld [vmem:[%s1 + $0x308] sm:$0xff]
          %v1016 = vld [vmem:[%s1 + $0x310] sm:$0xff]
          %v1017 = vld [vmem:[%s1 + $0x318] sm:$0xff]
          %v1018 = vld [vmem:[%s1 + $0x320] sm:$0xff]
          %v1019 = vld [vmem:[%s1 + $0x328] sm:$0xff]
          %v1020 = vld [vmem:[%s1 + $0x330] sm:$0xff]
          %v1021 = vld [vmem:[%s1 + $0x338] sm:$0xff]
          %v1022 = vld [vmem:[%s1 + $0x340] sm:$0xff]
          %v1023 = vld [vmem:[%s1 + $0x348] sm:$0xff]
          %v1024 = vld [vmem:[%s1 + $0x350] sm:$0xff]
          %v1025 = vld [vmem:[%s1 + $0x358] sm:$0xff]
          %v1026 = vld [vmem:[%s1 + $0x360] sm:$0xff]
          %v1027 = vld [vmem:[%s1 + $0x368] sm:$0xff]
          %v1028 = vld [vmem:[%s1 + $0x370] sm:$0xff]
          %v1029 = vld [vmem:[%s1 + $0x378] sm:$0xff]
          %v1030 = vld [vmem:[%s1 + $0x380] sm:$0xff]
          %v1031 = vld [vmem:[%s1 + $0x388] sm:$0xff]
          %v1032 = vld [vmem:[%s1 + $0x390] sm:$0xff]
          %v1033 = vld [vmem:[%s1 + $0x398] sm:$0xff]
          %v1034 = vld [vmem:[%s1 + $0x3a0] sm:$0xff]
          %v1035 = vld [vmem:[%s1 + $0x3a8] sm:$0xff]
          %v1036 = vld [vmem:[%s1 + $0x3b0] sm:$0xff]
          %v1037 = vld [vmem:[%s1 + $0x3b8] sm:$0xff]
          %v1038 = vld [vmem:[#allocation6] sm:$0x1]
          %v1040 = vperm.slane %v917, 0
          %v1041 = vperm.slane %v917, 1
          %v1042 = vperm.slane %v917, 2
          %v1043 = vperm.slane %v917, 3
          %v1044 = vperm.slane %v917, 4
          %v1045 = vperm.slane %v917, 5
          %v1046 = vperm.slane %v917, 6
          %v1047 = vperm.slane %v917, 7
          %vm1055 = vcmask 523264
          %v1056 = vsel %vm1055, %v1047, 0
          %1058 = vmatpush.msra.mxu0 %v933
          %1059 = vmatpush.msra.mxu0 %v932
          %1060 = vmatpush.msra.mxu0 %v931
          %1061 = vmatpush.msra.mxu0 %v930
          %1062 = vmatpush.msra.mxu0 %v929
          %1063 = vmatpush.msra.mxu0 %v928
          %1064 = vmatpush.msra.mxu0 %v927
          %1065 = vmatpush.msra.mxu0 %v926
          %1066 = vmatpush.msra.mxu0 %v925
          %1067 = vmatpush.msra.mxu0 %v924
          %1068 = vmatpush.msra.mxu0 %v923
          %1069 = vmatpush.msra.mxu0 %v922
          %1070 = vmatpush.msra.mxu0 %v921
          %1071 = vmatpush.msra.mxu0 %v920
          %1072 = vmatpush.msra.mxu0 %v919
          %1073 = vmatpush.msra.mxu0 %v918
          %1074 = vmatmul.f32.gmra.mxu0 %v1040
          %v1075 = vpop.f32.mrf.mxu0
          %v1076 = vadd.f32 %v1038, %v1075
          %1077 = vdwg.mxu0
          %1078 = vmatpush.msra.mxu0 %v949
          %1079 = vmatpush.msra.mxu0 %v948
          %1080 = vmatpush.msra.mxu0 %v947
          %1081 = vmatpush.msra.mxu0 %v946
          %1082 = vmatpush.msra.mxu0 %v945
          %1083 = vmatpush.msra.mxu0 %v944
          %1084 = vmatpush.msra.mxu0 %v943
          %1085 = vmatpush.msra.mxu0 %v942
          %1086 = vmatpush.msra.mxu0 %v941
          %1087 = vmatpush.msra.mxu0 %v940
          %1088 = vmatpush.msra.mxu0 %v939
          %1089 = vmatpush.msra.mxu0 %v938
          %1090 = vmatpush.msra.mxu0 %v937
          %1091 = vmatpush.msra.mxu0 %v936
          %1092 = vmatpush.msra.mxu0 %v935
          %1093 = vmatpush.msra.mxu0 %v934
          %1094 = vmatmul.f32.gmra.mxu0 %v1041
          %v1095 = vpop.f32.mrf.mxu0
          %v1096 = vadd.f32 %v1076, %v1095
          %1097 = vdwg.mxu0
          %1098 = vmatpush.msra.mxu0 %v965
          %1099 = vmatpush.msra.mxu0 %v964
          %1100 = vmatpush.msra.mxu0 %v963
          %1101 = vmatpush.msra.mxu0 %v962
          %1102 = vmatpush.msra.mxu0 %v961
          %1103 = vmatpush.msra.mxu0 %v960
          %1104 = vmatpush.msra.mxu0 %v959
          %1105 = vmatpush.msra.mxu0 %v958
          %1106 = vmatpush.msra.mxu0 %v957
          %1107 = vmatpush.msra.mxu0 %v956
          %1108 = vmatpush.msra.mxu0 %v955
          %1109 = vmatpush.msra.mxu0 %v954
          %1110 = vmatpush.msra.mxu0 %v953
          %1111 = vmatpush.msra.mxu0 %v952
          %1112 = vmatpush.msra.mxu0 %v951
          %1113 = vmatpush.msra.mxu0 %v950
          %1114 = vmatmul.f32.gmra.mxu0 %v1042
          %v1115 = vpop.f32.mrf.mxu0
          %v1116 = vadd.f32 %v1096, %v1115
          %1117 = vdwg.mxu0
          %1118 = vmatpush.msra.mxu0 %v981
          %1119 = vmatpush.msra.mxu0 %v980
          %1120 = vmatpush.msra.mxu0 %v979
          %1121 = vmatpush.msra.mxu0 %v978
          %1122 = vmatpush.msra.mxu0 %v977
          %1123 = vmatpush.msra.mxu0 %v976
          %1124 = vmatpush.msra.mxu0 %v975
          %1125 = vmatpush.msra.mxu0 %v974
          %1126 = vmatpush.msra.mxu0 %v973
          %1127 = vmatpush.msra.mxu0 %v972
          %1128 = vmatpush.msra.mxu0 %v971
          %1129 = vmatpush.msra.mxu0 %v970
          %1130 = vmatpush.msra.mxu0 %v969
          %1131 = vmatpush.msra.mxu0 %v968
          %1132 = vmatpush.msra.mxu0 %v967
          %1133 = vmatpush.msra.mxu0 %v966
          %1134 = vmatmul.f32.gmra.mxu0 %v1043
          %v1135 = vpop.f32.mrf.mxu0
          %v1136 = vadd.f32 %v1116, %v1135
          %1137 = vdwg.mxu0
          %1138 = vmatpush.msra.mxu0 %v997
          %1139 = vmatpush.msra.mxu0 %v996
          %1140 = vmatpush.msra.mxu0 %v995
          %1141 = vmatpush.msra.mxu0 %v994
          %1142 = vmatpush.msra.mxu0 %v993
          %1143 = vmatpush.msra.mxu0 %v992
          %1144 = vmatpush.msra.mxu0 %v991
          %1145 = vmatpush.msra.mxu0 %v990
          %1146 = vmatpush.msra.mxu0 %v989
          %1147 = vmatpush.msra.mxu0 %v988
          %1148 = vmatpush.msra.mxu0 %v987
          %1149 = vmatpush.msra.mxu0 %v986
          %1150 = vmatpush.msra.mxu0 %v985
          %1151 = vmatpush.msra.mxu0 %v984
          %1152 = vmatpush.msra.mxu0 %v983
          %1153 = vmatpush.msra.mxu0 %v982
          %1154 = vmatmul.f32.gmra.mxu0 %v1044
          %v1155 = vpop.f32.mrf.mxu0
          %v1156 = vadd.f32 %v1136, %v1155
          %1157 = vdwg.mxu0
          %1158 = vmatpush.msra.mxu0 %v1013
          %1159 = vmatpush.msra.mxu0 %v1012
          %1160 = vmatpush.msra.mxu0 %v1011
          %1161 = vmatpush.msra.mxu0 %v1010
          %1162 = vmatpush.msra.mxu0 %v1009
          %1163 = vmatpush.msra.mxu0 %v1008
          %1164 = vmatpush.msra.mxu0 %v1007
          %1165 = vmatpush.msra.mxu0 %v1006
          %1166 = vmatpush.msra.mxu0 %v1005
          %1167 = vmatpush.msra.mxu0 %v1004
          %1168 = vmatpush.msra.mxu0 %v1003
          %1169 = vmatpush.msra.mxu0 %v1002
          %1170 = vmatpush.msra.mxu0 %v1001
          %1171 = vmatpush.msra.mxu0 %v1000
          %1172 = vmatpush.msra.mxu0 %v999
          %1173 = vmatpush.msra.mxu0 %v998
          %1174 = vmatmul.f32.gmra.mxu0 %v1045
          %v1175 = vpop.f32.mrf.mxu0
          %v1176 = vadd.f32 %v1156, %v1175
          %1177 = vdwg.mxu0
          %1178 = vmatpush.msra.mxu0 %v1029
          %1179 = vmatpush.msra.mxu0 %v1028
          %1180 = vmatpush.msra.mxu0 %v1027
          %1181 = vmatpush.msra.mxu0 %v1026
          %1182 = vmatpush.msra.mxu0 %v1025
          %1183 = vmatpush.msra.mxu0 %v1024
          %1184 = vmatpush.msra.mxu0 %v1023
          %1185 = vmatpush.msra.mxu0 %v1022
          %1186 = vmatpush.msra.mxu0 %v1021
          %1187 = vmatpush.msra.mxu0 %v1020
          %1188 = vmatpush.msra.mxu0 %v1019
          %1189 = vmatpush.msra.mxu0 %v1018
          %1190 = vmatpush.msra.mxu0 %v1017
          %1191 = vmatpush.msra.mxu0 %v1016
          %1192 = vmatpush.msra.mxu0 %v1015
          %1193 = vmatpush.msra.mxu0 %v1014
          %1194 = vmatmul.f32.gmra.mxu0 %v1046
          %v1195 = vpop.f32.mrf.mxu0
          %v1196 = vadd.f32 %v1176, %v1195
          %1197 = vdwg.mxu0
          %1198 = vmatpush.msra.mxu0 0.0
          %1199 = vmatpush.msra.mxu0 0.0
          %1200 = vmatpush.msra.mxu0 0.0
          %1201 = vmatpush.msra.mxu0 0.0
          %1202 = vmatpush.msra.mxu0 0.0
          %1203 = vmatpush.msra.mxu0 0.0
          %1204 = vmatpush.msra.mxu0 0.0
          %1205 = vmatpush.msra.mxu0 0.0
          %1206 = vmatpush.msra.mxu0 %v1037
          %1207 = vmatpush.msra.mxu0 %v1036
          %1208 = vmatpush.msra.mxu0 %v1035
          %1209 = vmatpush.msra.mxu0 %v1034
          %1210 = vmatpush.msra.mxu0 %v1033
          %1211 = vmatpush.msra.mxu0 %v1032
          %1212 = vmatpush.msra.mxu0 %v1031
          %1213 = vmatpush.msra.mxu0 %v1030
          %1214 = vmatmul.f32.gmra.mxu0 %v1056
          %v1215 = vpop.f32.mrf.mxu0
          %v1216 = vadd.f32 %v1196, %v1215
          %1217 = vdwg.mxu0
          %v1218 = vmax.f32 %v1216, 0.0
          %v1219 = vld [vmem:[%s3] sm:$0xff]
          %v1220 = vld [vmem:[#allocation8] sm:$0x1]
          %vm1221 = vcmask 64512
          %v1223 = vsel %vm1221, %v1218, 0
          %1225 = vmatpush.msra.mxu0 0.0
          %1226 = vmatpush.msra.mxu0 0.0
          %1227 = vmatpush.msra.mxu0 0.0
          %1228 = vmatpush.msra.mxu0 0.0
          %1229 = vmatpush.msra.mxu0 0.0
          %1230 = vmatpush.msra.mxu0 0.0
          %1231 = vmatpush.msra.mxu0 0.0
          %1232 = vmatpush.msra.mxu0 0.0
          %1233 = vmatpush.msra.mxu0 0.0
          %1234 = vmatpush.msra.mxu0 0.0
          %1235 = vmatpush.msra.mxu0 0.0
          %1236 = vmatpush.msra.mxu0 0.0
          %1237 = vmatpush.msra.mxu0 0.0
          %1238 = vmatpush.msra.mxu0 0.0
          %1239 = vmatpush.msra.mxu0 0.0
          %1240 = vmatpush.msra.mxu0 %v1219
          %1241 = vmatmul.f32.gmra.mxu0 %v1223
          %v1242 = vpop.f32.mrf.mxu0
          %v1243 = vadd.f32 %v1220, %v1242
          %1244 = vdwg.mxu0
          %vm1245 = vcmask 24576
          %1246 = vst.msk [vmem:[%s289] sm:$0x1] %vm1245, %v1243
        $region60: #{oa_layer_forward.1} parent=39 // pred_fallthru
          _
        %s1247 = sand.u32 %s155, 1
        %s1248 = scalar_lea.sflag [#allocation5], %s1247
        %s1249 = sand.u32 %s155, 1
        %s1250 = scalar_lea.vmem [#allocation9], %s1249
        // Predicated region
        $region61: #{oa_layer_forward.1} parent=39 // pred_check
          %p1251 = pneg %p165
        $region62: #{oa_layer_forward.1} parent=39 // pred_check_branch
          %1253 = sbr.rel (%p1251) target = $region64
        $region63: #{oa_layer_forward.1} parent=39 // pred_region
          %1255 = vsyncadd %s1248, 0
          %s1256 = scalar_lea.hbm %s5, %s27
          %s1258 = sshll.u32 %s1250, 4
          %s1259 = int_to_ptr.vmem [resolvable:$true] %s1258
          %s1260 = sshll.u32 %s1256, 4
          %s1261 = int_to_ptr.hbm [resolvable:$true] %s1260
          %1263 = dma.vmem_to_hbm [thread:$0]  %s1259, 16, %s1261, %s1248
        $region64: #{oa_layer_forward.1} parent=39 // pred_fallthru
          _
      $region40: #{oa_layer_forward.1} parent=5 // pred_fallthru
        _
      %p1264 = scmp.le.s32.totalorder 2, %s18
      // Predicated region
      $region65: #{oa_layer_forward.1} parent=5 // pred_check
        %p1265 = pneg %p1264
      $region66: #{oa_layer_forward.1} parent=5 // pred_check_branch
        %1267 = sbr.rel (%p1265) target = $region68
      $region67: #{oa_layer_forward.1} parent=5 // pred_region
        %s1268 = ssub.s32 %s18, 2
        // Predicated region
        $region69: #{oa_layer_forward.1} parent=67 // pred_check
          %p1269 = pneg %p171
        $region70: #{oa_layer_forward.1} parent=67 // pred_check_branch
          %1271 = sbr.rel (%p1269) target = $region72
        $region71: #{oa_layer_forward.1} parent=67 // pred_region
          %s1272 = sand.u32 %s156, 1
          %s1273 = scalar_lea.sflag [#allocation5], %s1272
          %s1274 = sand.u32 %s156, 1
          %s1275 = scalar_lea.vmem [#allocation9], %s1274
          %1277 = dma.done %s1273, 16
        $region72: #{oa_layer_forward.1} parent=67 // pred_fallthru
          _
      $region68: #{oa_layer_forward.1} parent=5 // pred_fallthru
        _
    $region6: #{oa_layer_forward.1} parent=1 // loop_footer
      %s22 = sadd.s32 1, %s18
    $region7: #{oa_layer_forward.1} parent=1 // loop_footer_branch
      %17 = sbr.rel target = $region3
    $region8: #{oa_layer_forward.1} parent=1 // loop_exit
      _
    %1278 = vsyncpa [#allocation4], 1
    %s1279 = scalar_lea.sflag [#allocation4], 1
    %1280 = vsyncpa %s1279, 1
    %1281 = vsyncpa [#allocation7], 1
    %1282 = vsyncpa [#allocation5], 1
    %s1283 = scalar_lea.sflag [#allocation5], 1
    %1284 = vsyncpa %s1283, 1

</llo_original>
